<compile_context>
chip_gen: v5e
topology: v5e:2x2
jax: 0.10.0
libtpu: 0.0.40
codegen_flags: <defaults>
</compile_context>

<pallas_src>
import jax
import jax.numpy as jnp
from jax.experimental import pallas as pl
from jax.experimental.pallas import tpu as pltpu

TB_MAX = 1024     # max batch rows per grid step (sweepable; ~3-4 MiB VMEM at 1024)
H1 = 128
H2 = 128
F_IN = 34


def dnn_kernel(x_ref, w1_ref, b1_ref, w2_ref, b2_ref, w3_ref, b3_ref, o_ref):
    """Fused 3-layer MLP forward: relu(xW1+b1) -> relu(.W2+b2) -> .W3+b3.

    x is cast to bf16 in-register (no wrapper HBM pass); weights are bf16;
    accumulation and biases are f32; the output is the narrow f32 logits tile.
    """
    x = x_ref[...].astype(jnp.bfloat16)                                   # (TB, 34)

    h1 = jnp.dot(x, w1_ref[...], preferred_element_type=jnp.float32) + b1_ref[...]
    h1 = jnp.maximum(h1, 0.0).astype(jnp.bfloat16)                        # (TB, 128)

    h2 = jnp.dot(h1, w2_ref[...], preferred_element_type=jnp.float32) + b2_ref[...]
    h2 = jnp.maximum(h2, 0.0).astype(jnp.bfloat16)                        # (TB, 128)

    out = jnp.dot(h2, w3_ref[...], preferred_element_type=jnp.float32) + b3_ref[...]
    o_ref[...] = out.astype(o_ref.dtype)                                  # (TB, num_classes)


def _round_up(n, m):
    return ((n + m - 1) // m) * m


def _pick_tile(B, tb_max=TB_MAX):
    """Batch tile: 128-aligned, <= tb_max, and >= 2 grid steps when B allows it
    (keeps both TensorCores fed on v7x; harmless on v5e/v6e)."""
    tb = min(tb_max, _round_up(pl.cdiv(B, 2), 128))
    if tb >= B:            # tiny batch: one block covering the whole array
        tb = B
    return tb


def dnn_forward(x, params, num_classes, tb_max=TB_MAX):
    """Run the fused MLP kernel. x: [B, 34] (f32 or bf16); returns [B, num_classes] f32."""
    w1, b1, w2, b2, w3, b3 = params
    B, F = x.shape
    tb = _pick_tile(B, tb_max)
    n_blocks = pl.cdiv(B, tb)                 # ragged last block handled by Pallas masking

    flops = 2 * B * (F * H1 + H1 * H2 + H2 * num_classes)
    bytes_accessed = (
        int(x.size) * x.dtype.itemsize
        + B * num_classes * 4
        + sum(int(p.size) * p.dtype.itemsize for p in params)
    )

    out = pl.pallas_call(
        dnn_kernel,
        out_shape=jax.ShapeDtypeStruct((B, num_classes), jnp.float32),
        grid=(n_blocks,),
        in_specs=[
            pl.BlockSpec((tb, F), lambda i: (i, 0)),        # x: tiled along batch
            pl.BlockSpec(w1.shape, lambda i: (0, 0)),       # weights/biases: VMEM-resident
            pl.BlockSpec(b1.shape, lambda i: (0, 0)),
            pl.BlockSpec(w2.shape, lambda i: (0, 0)),
            pl.BlockSpec(b2.shape, lambda i: (0, 0)),
            pl.BlockSpec(w3.shape, lambda i: (0, 0)),
            pl.BlockSpec(b3.shape, lambda i: (0, 0)),
        ],
        out_specs=pl.BlockSpec((tb, num_classes), lambda i: (i, 0)),
        compiler_params=pltpu.CompilerParams(
            dimension_semantics=("parallel",),              # shards batch across TCs on v7x
        ),
        cost_estimate=pl.CostEstimate(
            flops=flops, transcendentals=0, bytes_accessed=bytes_accessed),
    )(x, w1, b1, w2, b2, w3, b3)

    return out


def init_params(key, num_classes):
    """Deterministic params mimicking torch.nn.Linear default init
    (uniform(-1/sqrt(fan_in), 1/sqrt(fan_in)) for weight and bias).

    Weights are stored as [in, out] (pre-transposed for x @ W) in bf16; biases
    as [1, out] f32 rows.  No lane padding of the last layer: the kernel writes
    the narrow logits directly."""
    dims = [(F_IN, H1), (H1, H2), (H2, num_classes)]
    params = []
    for fan_in, fan_out in dims:
        key, kw, kb = jax.random.split(key, 3)
        bound = 1.0 / jnp.sqrt(jnp.float32(fan_in))
        w = jax.random.uniform(kw, (fan_in, fan_out), jnp.float32, -bound, bound)
        b = jax.random.uniform(kb, (1, fan_out), jnp.float32, -bound, bound)
        params.extend([w.astype(jnp.bfloat16), b.astype(jnp.float32)])
    return tuple(params)


def _reference(x, params, num_classes):
    """Plain-JAX reference following the same dtype path (bf16 operands, f32 accum)."""
    w1, b1, w2, b2, w3, b3 = params
    hp = jax.lax.Precision.HIGHEST
    xf = x.astype(jnp.bfloat16).astype(jnp.float32)
    h1 = jnp.maximum(jnp.dot(xf, w1.astype(jnp.float32), precision=hp) + b1, 0.0)
    h1 = h1.astype(jnp.bfloat16).astype(jnp.float32)
    h2 = jnp.maximum(jnp.dot(h1, w2.astype(jnp.float32), precision=hp) + b2, 0.0)
    h2 = h2.astype(jnp.bfloat16).astype(jnp.float32)
    return jnp.dot(h2, w3.astype(jnp.float32), precision=hp) + b3


if __name__ == "__main__":
    num_classes = 8
    batch = 300   # not a multiple of the tile -> exercises the ragged last block + 2-step grid

    key = jax.random.PRNGKey(0)
    key, kx = jax.random.split(key)
    x = jax.random.normal(kx, (batch, F_IN), jnp.float32)

    params = init_params(key, num_classes)

    out = dnn_forward(x, params, num_classes)
    out = jax.block_until_ready(out)

    ref = _reference(x, params, num_classes)
    assert out.shape == (batch, num_classes)
    assert jnp.allclose(out, ref, atol=2e-2, rtol=2e-2), (
        float(jnp.max(jnp.abs(out - ref))))

    print("KERNEL_OK")
</pallas_src>

<mosaic_0001>
module attributes {stable_mosaic.version = 11 : i64} {
  func.func @dnn_kernel(%arg0: i32, %arg1: memref<256x34xf32, #tpu.memory_space<vmem>>, %arg2: memref<34x128xbf16, #tpu.memory_space<vmem>>, %arg3: memref<1x128xf32, #tpu.memory_space<vmem>>, %arg4: memref<128x128xbf16, #tpu.memory_space<vmem>>, %arg5: memref<1x128xf32, #tpu.memory_space<vmem>>, %arg6: memref<128x8xbf16, #tpu.memory_space<vmem>>, %arg7: memref<1x8xf32, #tpu.memory_space<vmem>>, %arg8: memref<256x8xf32, #tpu.memory_space<vmem>>) attributes {dimension_semantics = [#tpu.dimension_semantics<parallel>], iteration_bounds = array<i64: 2>, scalar_prefetch = 0 : i64, scratch_operands = 0 : i64, tpu.core_type = #tpu.core_type<tc>, window_params = [{transform_indices = @transform_0, window_bounds = array<i64: 256, 34>}, {pipeline_mode = #tpu.pipeline_mode<synchronous>, transform_indices = @transform_1, window_bounds = array<i64: 34, 128>}, {pipeline_mode = #tpu.pipeline_mode<synchronous>, transform_indices = @transform_2, window_bounds = array<i64: 1, 128>}, {pipeline_mode = #tpu.pipeline_mode<synchronous>, transform_indices = @transform_3, window_bounds = array<i64: 128, 128>}, {pipeline_mode = #tpu.pipeline_mode<synchronous>, transform_indices = @transform_4, window_bounds = array<i64: 1, 128>}, {pipeline_mode = #tpu.pipeline_mode<synchronous>, transform_indices = @transform_5, window_bounds = array<i64: 128, 8>}, {pipeline_mode = #tpu.pipeline_mode<synchronous>, transform_indices = @transform_6, window_bounds = array<i64: 1, 8>}, {transform_indices = @transform_7, window_bounds = array<i64: 256, 8>}]} {
    %c0 = arith.constant 0 : index
    %c0_0 = arith.constant 0 : index
    %0 = vector.load %arg1[%c0, %c0_0] : memref<256x34xf32, #tpu.memory_space<vmem>>, vector<256x34xf32>
    %1 = arith.truncf %0 : vector<256x34xf32> to vector<256x34xbf16>
    %c0_1 = arith.constant 0 : index
    %c0_2 = arith.constant 0 : index
    %2 = vector.load %arg2[%c0_1, %c0_2] : memref<34x128xbf16, #tpu.memory_space<vmem>>, vector<34x128xbf16>
    %cst = arith.constant dense<0.000000e+00> : vector<256x128xf32>
    %3 = tpu.matmul %1, %2, %cst {dimension_numbers = #tpu.dot_dimension_numbers<[1], [0], [0], [1], [0, 0, 1, 1], [], []>} : vector<256x34xbf16>, vector<34x128xbf16>, vector<256x128xf32> -> vector<256x128xf32>
    %c0_3 = arith.constant 0 : index
    %c0_4 = arith.constant 0 : index
    %4 = vector.load %arg3[%c0_3, %c0_4] : memref<1x128xf32, #tpu.memory_space<vmem>>, vector<1x128xf32>
    %5 = vector.broadcast %4 : vector<1x128xf32> to vector<256x128xf32>
    %6 = arith.addf %3, %5 : vector<256x128xf32>
    %cst_5 = arith.constant 0.000000e+00 : f32
    %7 = vector.broadcast %cst_5 : f32 to vector<256x128xf32>
    %8 = arith.maximumf %6, %7 : vector<256x128xf32>
    %9 = arith.truncf %8 : vector<256x128xf32> to vector<256x128xbf16>
    %c0_6 = arith.constant 0 : index
    %c0_7 = arith.constant 0 : index
    %10 = vector.load %arg4[%c0_6, %c0_7] : memref<128x128xbf16, #tpu.memory_space<vmem>>, vector<128x128xbf16>
    %cst_8 = arith.constant dense<0.000000e+00> : vector<256x128xf32>
    %11 = tpu.matmul %9, %10, %cst_8 {dimension_numbers = #tpu.dot_dimension_numbers<[1], [0], [0], [1], [0, 0, 1, 1], [], []>} : vector<256x128xbf16>, vector<128x128xbf16>, vector<256x128xf32> -> vector<256x128xf32>
    %c0_9 = arith.constant 0 : index
    %c0_10 = arith.constant 0 : index
    %12 = vector.load %arg5[%c0_9, %c0_10] : memref<1x128xf32, #tpu.memory_space<vmem>>, vector<1x128xf32>
    %13 = vector.broadcast %12 : vector<1x128xf32> to vector<256x128xf32>
    %14 = arith.addf %11, %13 : vector<256x128xf32>
    %cst_11 = arith.constant 0.000000e+00 : f32
    %15 = vector.broadcast %cst_11 : f32 to vector<256x128xf32>
    %16 = arith.maximumf %14, %15 : vector<256x128xf32>
    %17 = arith.truncf %16 : vector<256x128xf32> to vector<256x128xbf16>
    %c0_12 = arith.constant 0 : index
    %c0_13 = arith.constant 0 : index
    %18 = vector.load %arg6[%c0_12, %c0_13] : memref<128x8xbf16, #tpu.memory_space<vmem>>, vector<128x8xbf16>
    %cst_14 = arith.constant dense<0.000000e+00> : vector<256x8xf32>
    %19 = tpu.matmul %17, %18, %cst_14 {dimension_numbers = #tpu.dot_dimension_numbers<[1], [0], [0], [1], [0, 0, 1, 1], [], []>} : vector<256x128xbf16>, vector<128x8xbf16>, vector<256x8xf32> -> vector<256x8xf32>
    %c0_15 = arith.constant 0 : index
    %c0_16 = arith.constant 0 : index
    %20 = vector.load %arg7[%c0_15, %c0_16] : memref<1x8xf32, #tpu.memory_space<vmem>>, vector<1x8xf32>
    %21 = vector.broadcast %20 : vector<1x8xf32> to vector<256x8xf32>
    %22 = arith.addf %19, %21 : vector<256x8xf32>
    %c0_17 = arith.constant 0 : index
    %c0_18 = arith.constant 0 : index
    %23 = vector.load %arg8[%c0_17, %c0_18] : memref<256x8xf32, #tpu.memory_space<vmem>>, vector<256x8xf32>
    tpu.vector_store %arg8[%c0_17, %c0_18], %22 {strides = array<i32>} : memref<256x8xf32, #tpu.memory_space<vmem>>, vector<256x8xf32>,
    return
  }
  func.func @transform_0(%arg0: i32) -> (i32, i32) {
    %c0_i32 = arith.constant 0 : i32
    %c0_i32_0 = arith.constant 0 : i32
    return %arg0, %c0_i32 : i32, i32
  }
  func.func @transform_1(%arg0: i32) -> (i32, i32) {
    %c0_i32 = arith.constant 0 : i32
    %c0_i32_0 = arith.constant 0 : i32
    %c0_i32_1 = arith.constant 0 : i32
    return %c0_i32, %c0_i32_0 : i32, i32
  }
  func.func @transform_2(%arg0: i32) -> (i32, i32) {
    %c0_i32 = arith.constant 0 : i32
    %c0_i32_0 = arith.constant 0 : i32
    %c0_i32_1 = arith.constant 0 : i32
    return %c0_i32, %c0_i32_0 : i32, i32
  }
  func.func @transform_3(%arg0: i32) -> (i32, i32) {
    %c0_i32 = arith.constant 0 : i32
    %c0_i32_0 = arith.constant 0 : i32
    %c0_i32_1 = arith.constant 0 : i32
    return %c0_i32, %c0_i32_0 : i32, i32
  }
  func.func @transform_4(%arg0: i32) -> (i32, i32) {
    %c0_i32 = arith.constant 0 : i32
    %c0_i32_0 = arith.constant 0 : i32
    %c0_i32_1 = arith.constant 0 : i32
    return %c0_i32, %c0_i32_0 : i32, i32
  }
  func.func @transform_5(%arg0: i32) -> (i32, i32) {
    %c0_i32 = arith.constant 0 : i32
    %c0_i32_0 = arith.constant 0 : i32
    %c0_i32_1 = arith.constant 0 : i32
    return %c0_i32, %c0_i32_0 : i32, i32
  }
  func.func @transform_6(%arg0: i32) -> (i32, i32) {
    %c0_i32 = arith.constant 0 : i32
    %c0_i32_0 = arith.constant 0 : i32
    %c0_i32_1 = arith.constant 0 : i32
    return %c0_i32, %c0_i32_0 : i32, i32
  }
  func.func @transform_7(%arg0: i32) -> (i32, i32) {
    %c0_i32 = arith.constant 0 : i32
    %c0_i32_0 = arith.constant 0 : i32
    return %arg0, %c0_i32 : i32, i32
  }
}

</mosaic_0001>

<llo_original>
// kernel: tpu_custom_call.1
$region0: #{tpu_custom_call.1}
  #allocation0 [shape = 'u32[]', space=smem, size = 0x4, offset = 0x4, fixed_abs, tag = 'smem constant byte address 0x4 - core index']
  #allocation1 [shape = 'u32[72,128]{1,0:T(1,128)}', space=vmem, size = 0x9000, scoped, tag = 'internal scratch']
  %s0 = inlined_call_operand.vmem [shape: f32[300,34], index: 0, kind: input, shape index: {}]
  %s1 = inlined_call_operand.vmem [shape: bf16[34,128], index: 1, kind: input, shape index: {}]
  %s2 = inlined_call_operand.vmem [shape: f32[1,128], index: 2, kind: input, shape index: {}]
  %s3 = inlined_call_operand.vmem [shape: bf16[128,128], index: 3, kind: input, shape index: {}]
  %s4 = inlined_call_operand.vmem [shape: f32[1,128], index: 4, kind: input, shape index: {}]
  %s5 = inlined_call_operand.vmem [shape: bf16[128,8], index: 5, kind: input, shape index: {}]
  %s6 = inlined_call_operand.vmem [shape: f32[1,8], index: 6, kind: input, shape index: {}]
  %s7 = inlined_call_operand.vmem [shape: f32[300,8], index: 7, kind: output, shape index: {}]
  %s8 = sld [smem:[#allocation0]]
  $region109: #{tpu_custom_call.1} parent=0
    _
  %s10 = ssub.s32 1, %s8
  %s11 = scalar_select 0, %s10, %s8
  $region1: #{tpu_custom_call.1} parent=0
    #allocation2 [shape = 'u8[262144]{0}', space=vmem, size = 0x40000, scoped, tag = 'output window, operand 0']
    loop: start=0, step=1, limit=4
    $region2: #{tpu_custom_call.1} parent=1 // loop_pre_header
      _
    $region3: #{tpu_custom_call.1} parent=1 // loop_header
      %s13 = sphi 0, %s17
      %p14 = scmp.ge.s32.totalorder %s13, 4
      %s23 = sphi 0, %s25
      %s26 = sphi 0, %s23
      %s27 = sphi 0, %s26
      %s43 = sphi 0, %s27
      %s47 = sphi 0, %s47
      %s49 = sphi 0, %s47
      %s50 = sphi 0, %s49
      %s64 = sphi 0, %s50
      %s68 = sphi 0, %s68
      %s70 = sphi 0, %s68
      %s71 = sphi 0, %s70
      %s85 = sphi 0, %s71
      %s89 = sphi 0, %s89
      %s91 = sphi 0, %s89
      %s92 = sphi 0, %s91
      %s106 = sphi 0, %s92
      %s110 = sphi 0, %s110
      %s112 = sphi 0, %s110
      %s113 = sphi 0, %s112
      %s127 = sphi 0, %s113
      %s131 = sphi 0, %s131
      %s133 = sphi 0, %s131
      %s134 = sphi 0, %s133
      %s148 = sphi 0, %s134
      %s152 = sphi 0, %s152
      %s154 = sphi 0, %s152
      %s155 = sphi 0, %s154
      %s169 = sphi 0, %s155
      %s175 = sphi 0, %s177
      %s178 = sphi 0, %s175
      %s179 = sphi 0, %s178
      %s195 = sphi 0, %s179
    $region4: #{tpu_custom_call.1} parent=1 // loop_header_branch
      %16 = sbr.rel (%p14) target = $region8
    $region5: #{tpu_custom_call.1} parent=1 // loop_body
      %s18 = ssub.s32 %s13, 1
      %s19 = ssub.s32 %s13, 2
      %s20 = sadd.s32 %s13, 1
      %s21 = ssub.s32 %s13, %s20
      %p22 = scmp.eq.s32.totalorder %s21, 0
      %s24 = sadd.s32 %s23, 1
      %s25 = scalar_select %p22, %s23, %s24
      %p28 = pneg %p22
      %p29 = scmp.eq.s32.totalorder %s13, 1
      %p30 = por %p28, %p29
      %p31 = scmp.ne.s32.totalorder %s23, %s26
      %p32 = scmp.eq.s32.totalorder %s13, 0
      %p33 = por %p31, %p32
      %p34 = scmp.ne.s32.totalorder %s23, %s26
      %p35 = scmp.eq.s32.totalorder %s18, 1
      %p36 = por %p34, %p35
      %p37 = scmp.ne.s32.totalorder %s26, %s27
      %p38 = scmp.eq.s32.totalorder %s18, 0
      %p39 = por %p37, %p38
      %p40 = scmp.ne.s32.totalorder %s26, %s27
      %p41 = scmp.eq.s32.totalorder %s19, 1
      %p42 = por %p40, %p41
      %p44 = scmp.ne.s32.totalorder %s27, %s43
      %p45 = scmp.eq.s32.totalorder %s19, 0
      %p46 = por %p44, %p45
      %s48 = sadd.s32 %s47, 1
      %p51 = scmp.eq.s32.totalorder %s13, 1
      %p52 = scmp.ne.s32.totalorder %s47, %s49
      %p53 = scmp.eq.s32.totalorder %s13, 0
      %p54 = por %p52, %p53
      %p55 = scmp.ne.s32.totalorder %s47, %s49
      %p56 = scmp.eq.s32.totalorder %s18, 1
      %p57 = por %p55, %p56
      %p58 = scmp.ne.s32.totalorder %s49, %s50
      %p59 = scmp.eq.s32.totalorder %s18, 0
      %p60 = por %p58, %p59
      %p61 = scmp.ne.s32.totalorder %s49, %s50
      %p62 = scmp.eq.s32.totalorder %s19, 1
      %p63 = por %p61, %p62
      %p65 = scmp.ne.s32.totalorder %s50, %s64
      %p66 = scmp.eq.s32.totalorder %s19, 0
      %p67 = por %p65, %p66
      %s69 = sadd.s32 %s68, 1
      %p72 = scmp.eq.s32.totalorder %s13, 1
      %p73 = scmp.ne.s32.totalorder %s68, %s70
      %p74 = scmp.eq.s32.totalorder %s13, 0
      %p75 = por %p73, %p74
      %p76 = scmp.ne.s32.totalorder %s68, %s70
      %p77 = scmp.eq.s32.totalorder %s18, 1
      %p78 = por %p76, %p77
      %p79 = scmp.ne.s32.totalorder %s70, %s71
      %p80 = scmp.eq.s32.totalorder %s18, 0
      %p81 = por %p79, %p80
      %p82 = scmp.ne.s32.totalorder %s70, %s71
      %p83 = scmp.eq.s32.totalorder %s19, 1
      %p84 = por %p82, %p83
      %p86 = scmp.ne.s32.totalorder %s71, %s85
      %p87 = scmp.eq.s32.totalorder %s19, 0
      %p88 = por %p86, %p87
      %s90 = sadd.s32 %s89, 1
      %p93 = scmp.eq.s32.totalorder %s13, 1
      %p94 = scmp.ne.s32.totalorder %s89, %s91
      %p95 = scmp.eq.s32.totalorder %s13, 0
      %p96 = por %p94, %p95
      %p97 = scmp.ne.s32.totalorder %s89, %s91
      %p98 = scmp.eq.s32.totalorder %s18, 1
      %p99 = por %p97, %p98
      %p100 = scmp.ne.s32.totalorder %s91, %s92
      %p101 = scmp.eq.s32.totalorder %s18, 0
      %p102 = por %p100, %p101
      %p103 = scmp.ne.s32.totalorder %s91, %s92
      %p104 = scmp.eq.s32.totalorder %s19, 1
      %p105 = por %p103, %p104
      %p107 = scmp.ne.s32.totalorder %s92, %s106
      %p108 = scmp.eq.s32.totalorder %s19, 0
      %p109 = por %p107, %p108
      %s111 = sadd.s32 %s110, 1
      %p114 = scmp.eq.s32.totalorder %s13, 1
      %p115 = scmp.ne.s32.totalorder %s110, %s112
      %p116 = scmp.eq.s32.totalorder %s13, 0
      %p117 = por %p115, %p116
      %p118 = scmp.ne.s32.totalorder %s110, %s112
      %p119 = scmp.eq.s32.totalorder %s18, 1
      %p120 = por %p118, %p119
      %p121 = scmp.ne.s32.totalorder %s112, %s113
      %p122 = scmp.eq.s32.totalorder %s18, 0
      %p123 = por %p121, %p122
      %p124 = scmp.ne.s32.totalorder %s112, %s113
      %p125 = scmp.eq.s32.totalorder %s19, 1
      %p126 = por %p124, %p125
      %p128 = scmp.ne.s32.totalorder %s113, %s127
      %p129 = scmp.eq.s32.totalorder %s19, 0
      %p130 = por %p128, %p129
      %s132 = sadd.s32 %s131, 1
      %p135 = scmp.eq.s32.totalorder %s13, 1
      %p136 = scmp.ne.s32.totalorder %s131, %s133
      %p137 = scmp.eq.s32.totalorder %s13, 0
      %p138 = por %p136, %p137
      %p139 = scmp.ne.s32.totalorder %s131, %s133
      %p140 = scmp.eq.s32.totalorder %s18, 1
      %p141 = por %p139, %p140
      %p142 = scmp.ne.s32.totalorder %s133, %s134
      %p143 = scmp.eq.s32.totalorder %s18, 0
      %p144 = por %p142, %p143
      %p145 = scmp.ne.s32.totalorder %s133, %s134
      %p146 = scmp.eq.s32.totalorder %s19, 1
      %p147 = por %p145, %p146
      %p149 = scmp.ne.s32.totalorder %s134, %s148
      %p150 = scmp.eq.s32.totalorder %s19, 0
      %p151 = por %p149, %p150
      %s153 = sadd.s32 %s152, 1
      %p156 = scmp.eq.s32.totalorder %s13, 1
      %p157 = scmp.ne.s32.totalorder %s152, %s154
      %p158 = scmp.eq.s32.totalorder %s13, 0
      %p159 = por %p157, %p158
      %p160 = scmp.ne.s32.totalorder %s152, %s154
      %p161 = scmp.eq.s32.totalorder %s18, 1
      %p162 = por %p160, %p161
      %p163 = scmp.ne.s32.totalorder %s154, %s155
      %p164 = scmp.eq.s32.totalorder %s18, 0
      %p165 = por %p163, %p164
      %p166 = scmp.ne.s32.totalorder %s154, %s155
      %p167 = scmp.eq.s32.totalorder %s19, 1
      %p168 = por %p166, %p167
      %p170 = scmp.ne.s32.totalorder %s155, %s169
      %p171 = scmp.eq.s32.totalorder %s19, 0
      %p172 = por %p170, %p171
      %s173 = ssub.s32 %s13, %s20
      %p174 = scmp.eq.s32.totalorder %s173, 0
      %s176 = sadd.s32 %s175, 1
      %s177 = scalar_select %p174, %s175, %s176
      %p180 = pneg %p174
      %p181 = scmp.eq.s32.totalorder %s13, 1
      %p182 = por %p180, %p181
      %p183 = scmp.ne.s32.totalorder %s175, %s178
      %p184 = scmp.eq.s32.totalorder %s13, 0
      %p185 = por %p183, %p184
      %p186 = scmp.ne.s32.totalorder %s175, %s178
      %p187 = scmp.eq.s32.totalorder %s18, 1
      %p188 = por %p186, %p187
      %p189 = scmp.ne.s32.totalorder %s178, %s179
      %p190 = scmp.eq.s32.totalorder %s18, 0
      %p191 = por %p189, %p190
      %p192 = scmp.ne.s32.totalorder %s178, %s179
      %p193 = scmp.eq.s32.totalorder %s19, 1
      %p194 = por %p192, %p193
      %p196 = scmp.ne.s32.totalorder %s179, %s195
      %p197 = scmp.eq.s32.totalorder %s19, 0
      %p198 = por %p196, %p197
      %p199 = scmp.le.s32.totalorder 1, %s13
      %p200 = scmp.lt.s32.totalorder %s13, 3
      %p201 = pnand %p199, %p200
      %p202 = pneg %p201
      // Predicated region
      $region9: #{tpu_custom_call.1} parent=5 // pred_check
        _
      $region10: #{tpu_custom_call.1} parent=5 // pred_check_branch
        %204 = sbr.rel (%p201) target = $region12
      $region11: #{tpu_custom_call.1} parent=5 // pred_region
        %s205 = ssub.s32 %s13, 1
        // Predicated region
        $region13: #{tpu_custom_call.1} parent=11 // pred_check
          %p206 = pneg %p60
        $region14: #{tpu_custom_call.1} parent=11 // pred_check_branch
          %208 = sbr.rel (%p206) target = $region16
        $region15: #{tpu_custom_call.1} parent=11 // pred_region
          _
        $region16: #{tpu_custom_call.1} parent=11 // pred_fallthru
          _
        // Predicated region
        $region17: #{tpu_custom_call.1} parent=11 // pred_check
          %p209 = pneg %p81
        $region18: #{tpu_custom_call.1} parent=11 // pred_check_branch
          %211 = sbr.rel (%p209) target = $region20
        $region19: #{tpu_custom_call.1} parent=11 // pred_region
          _
        $region20: #{tpu_custom_call.1} parent=11 // pred_fallthru
          _
        // Predicated region
        $region21: #{tpu_custom_call.1} parent=11 // pred_check
          %p212 = pneg %p102
        $region22: #{tpu_custom_call.1} parent=11 // pred_check_branch
          %214 = sbr.rel (%p212) target = $region24
        $region23: #{tpu_custom_call.1} parent=11 // pred_region
          _
        $region24: #{tpu_custom_call.1} parent=11 // pred_fallthru
          _
        // Predicated region
        $region25: #{tpu_custom_call.1} parent=11 // pred_check
          %p215 = pneg %p123
        $region26: #{tpu_custom_call.1} parent=11 // pred_check_branch
          %217 = sbr.rel (%p215) target = $region28
        $region27: #{tpu_custom_call.1} parent=11 // pred_region
          _
        $region28: #{tpu_custom_call.1} parent=11 // pred_fallthru
          _
        // Predicated region
        $region29: #{tpu_custom_call.1} parent=11 // pred_check
          %p218 = pneg %p144
        $region30: #{tpu_custom_call.1} parent=11 // pred_check_branch
          %220 = sbr.rel (%p218) target = $region32
        $region31: #{tpu_custom_call.1} parent=11 // pred_region
          _
        $region32: #{tpu_custom_call.1} parent=11 // pred_fallthru
          _
        // Predicated region
        $region33: #{tpu_custom_call.1} parent=11 // pred_check
          %p221 = pneg %p165
        $region34: #{tpu_custom_call.1} parent=11 // pred_check_branch
          %223 = sbr.rel (%p221) target = $region36
        $region35: #{tpu_custom_call.1} parent=11 // pred_region
          _
        $region36: #{tpu_custom_call.1} parent=11 // pred_fallthru
          _
      $region12: #{tpu_custom_call.1} parent=5 // pred_fallthru
        _
      %p224 = scmp.lt.s32.totalorder %s13, 2
      // Predicated region
      $region37: #{tpu_custom_call.1} parent=5 // pred_check
        %p225 = pneg %p224
      $region38: #{tpu_custom_call.1} parent=5 // pred_check_branch
        %227 = sbr.rel (%p225) target = $region40
      $region39: #{tpu_custom_call.1} parent=5 // pred_region
        // Predicated region
        $region41: #{tpu_custom_call.1} parent=39 // pred_check
          %p228 = pneg %p33
        $region42: #{tpu_custom_call.1} parent=39 // pred_check_branch
          %230 = sbr.rel (%p228) target = $region44
        $region43: #{tpu_custom_call.1} parent=39 // pred_region
          %s231 = smul.u32 32, %s13
          %s232 = ssub.s32 38, %s231
          %p233 = scmp.lt.s32.totalorder %s232, 32
          %s234 = scalar_select %p233, %s232, 32
          %s235 = smul.u32 8, %s234
          %p236 = scmp.lt.s32.totalorder %s231, 37
          %s237 = scalar_select %p236, %s231, 37
          %s238 = smul.addr %s237, 8
          %s239 = scalar_lea.vmem %s0, %s238
          %s240 = smul.u32 32, %s13
          %s241 = ssub.s32 38, %s240
          %p242 = scmp.lt.s32.totalorder %s241, 32
          %s243 = scalar_select %p242, %s241, 32
          %s244 = smul.u32 8, %s243
        $region44: #{tpu_custom_call.1} parent=39 // pred_fallthru
          _
      $region40: #{tpu_custom_call.1} parent=5 // pred_fallthru
        _
      %p245 = scmp.le.s32.totalorder 1, %s13
      %p246 = scmp.lt.s32.totalorder %s13, 3
      %p247 = pnand %p245, %p246
      %p248 = pneg %p247
      // Predicated region
      $region45: #{tpu_custom_call.1} parent=5 // pred_check
        _
      $region46: #{tpu_custom_call.1} parent=5 // pred_check_branch
        %250 = sbr.rel (%p247) target = $region48
      $region47: #{tpu_custom_call.1} parent=5 // pred_region
        %s251 = ssub.s32 %s13, 1
        %s252 = smul.u32 32, %s18
        %s253 = ssub.s32 38, %s252
        %p254 = scmp.lt.s32.totalorder %s253, 32
        %s255 = scalar_select %p254, %s253, 32
        %s256 = smul.u32 8, %s255
        %p257 = scmp.lt.s32.totalorder %s252, 37
        %s258 = scalar_select %p257, %s252, 37
        %s259 = smul.addr %s258, 8
        %s260 = scalar_lea.vmem %s0, %s259
        %p261 = pneg %p39
        %p262 = pneg %p36
        %p263 = pneg %p60
        %p264 = pneg %p57
        %p265 = pneg %p81
        %p266 = pneg %p78
        %p267 = pneg %p102
        %p268 = pneg %p99
        %p269 = pneg %p123
        %p270 = pneg %p120
        %p271 = pneg %p144
        %p272 = pneg %p141
        %p273 = pneg %p165
        %p274 = pneg %p162
        %p275 = pneg %p191
        %p276 = pneg %p188
        %s277 = sand.u32 %s178, 1
        %s278 = sand.u32 %s178, 1
        %s279 = smul.addr %s278, 256
        %s280 = scalar_lea.vmem [#allocation2], %s279
        %s281 = smul.u32 32, %s18
        %s282 = ssub.s32 38, %s281
        %p283 = scmp.lt.s32.totalorder %s282, 32
        %s284 = scalar_select %p283, %s282, 32
        %s285 = smul.u32 8, %s284
        %p286 = scmp.lt.s32.totalorder %s281, 37
        %s287 = scalar_select %p286, %s281, 37
        %s288 = smul.addr %s287, 8
        %s289 = scalar_lea.vmem %s0, %s288
        %s290 = smul.u32 32, %s18
        %s291 = ssub.s32 38, %s290
        %p292 = scmp.lt.s32.totalorder %s291, 32
        %s293 = scalar_select %p292, %s291, 32
        %s294 = smul.u32 8, %s293
        %s295 = smul.u32 32, %s18
        %s296 = ssub.s32 38, %s295
        %p297 = scmp.lt.s32.totalorder %s296, 32
        %s298 = scalar_select %p297, %s296, 32
        %s299 = smul.u32 8, %s298
        %v301 = vld [vmem:[%s289] sm:$0xff]
        %v302 = vld [vmem:[%s289 + $0x8] sm:$0xff]
        %v303 = vld [vmem:[%s289 + $0x10] sm:$0xff]
        %v304 = vld [vmem:[%s289 + $0x18] sm:$0xff]
        %v305 = vld [vmem:[%s289 + $0x20] sm:$0xff]
        %v306 = vld [vmem:[%s289 + $0x28] sm:$0xff]
        %v307 = vld [vmem:[%s289 + $0x30] sm:$0xff]
        %v308 = vld [vmem:[%s289 + $0x38] sm:$0xff]
        %v309 = vld [vmem:[%s289 + $0x40] sm:$0xff]
        %v310 = vld [vmem:[%s289 + $0x48] sm:$0xff]
        %v311 = vld [vmem:[%s289 + $0x50] sm:$0xff]
        %v312 = vld [vmem:[%s289 + $0x58] sm:$0xff]
        %v313 = vld [vmem:[%s289 + $0x60] sm:$0xff]
        %v314 = vld [vmem:[%s289 + $0x68] sm:$0xff]
        %v315 = vld [vmem:[%s289 + $0x70] sm:$0xff]
        %v316 = vld [vmem:[%s289 + $0x78] sm:$0xff]
        %v317 = vld [vmem:[%s289 + $0x80] sm:$0xff]
        %v318 = vld [vmem:[%s289 + $0x88] sm:$0xff]
        %v319 = vld [vmem:[%s289 + $0x90] sm:$0xff]
        %v320 = vld [vmem:[%s289 + $0x98] sm:$0xff]
        %v321 = vld [vmem:[%s289 + $0xa0] sm:$0xff]
        %v322 = vld [vmem:[%s289 + $0xa8] sm:$0xff]
        %v323 = vld [vmem:[%s289 + $0xb0] sm:$0xff]
        %v324 = vld [vmem:[%s289 + $0xb8] sm:$0xff]
        %v325 = vld [vmem:[%s289 + $0xc0] sm:$0xff]
        %v326 = vld [vmem:[%s289 + $0xc8] sm:$0xff]
        %v327 = vld [vmem:[%s289 + $0xd0] sm:$0xff]
        %v328 = vld [vmem:[%s289 + $0xd8] sm:$0xff]
        %v329 = vld [vmem:[%s289 + $0xe0] sm:$0xff]
        %v330 = vld [vmem:[%s289 + $0xe8] sm:$0xff]
        %v331 = vld [vmem:[%s289 + $0xf0] sm:$0xff]
        %v332 = vld [vmem:[%s289 + $0xf8] sm:$0xff]
        %v333 = vpack.c.bf16 %v302, %v301
        %v334 = vpack.c.bf16 %v304, %v303
        %v335 = vpack.c.bf16 %v306, %v305
        %v336 = vpack.c.bf16 %v308, %v307
        %v337 = vpack.c.bf16 %v310, %v309
        %v338 = vpack.c.bf16 %v312, %v311
        %v339 = vpack.c.bf16 %v314, %v313
        %v340 = vpack.c.bf16 %v316, %v315
        %v341 = vpack.c.bf16 %v318, %v317
        %v342 = vpack.c.bf16 %v320, %v319
        %v343 = vpack.c.bf16 %v322, %v321
        %v344 = vpack.c.bf16 %v324, %v323
        %v345 = vpack.c.bf16 %v326, %v325
        %v346 = vpack.c.bf16 %v328, %v327
        %v347 = vpack.c.bf16 %v330, %v329
        %v348 = vpack.c.bf16 %v332, %v331
        %v349 = vld [vmem:[%s1] sm:$0xf]
        %v350 = vld [vmem:[%s1 + $0x4] sm:$0xf]
        %v351 = vld [vmem:[%s1 + $0x8] sm:$0xf]
        %v352 = vld [vmem:[%s1 + $0xc] sm:$0xf]
        %v353 = vld [vmem:[%s1 + $0x10] sm:$0x1]
        %v354 = vld [vmem:[%s2] sm:$0x1]
        %v356 = vperm.slane %v354, 0
        %v363 = vunpack.c.l.b16 %v349
        %v364 = vunpack.c.l.b16 %v350
        %v365 = vunpack.c.l.b16 %v351
        %v366 = vunpack.c.l.b16 %v352
        %v367 = vunpack.c.l.b16 %v353
        %v368 = vpack.c.b16 %v364, %v363
        %v369 = vpack.c.b16 %v366, %v365
        %v370 = vpack.c.b16 %v367, %v367
        %vm373 = vcmask 277504
        %v375 = vsel %vm373, %v333, 0
        %v378 = vsel %vm373, %v334, 0
        %v381 = vsel %vm373, %v335, 0
        %v384 = vsel %vm373, %v336, 0
        %v387 = vsel %vm373, %v337, 0
        %v390 = vsel %vm373, %v338, 0
        %v393 = vsel %vm373, %v339, 0
        %v396 = vsel %vm373, %v340, 0
        %v399 = vsel %vm373, %v341, 0
        %v402 = vsel %vm373, %v342, 0
        %v405 = vsel %vm373, %v343, 0
        %v408 = vsel %vm373, %v344, 0
        %v411 = vsel %vm373, %v345, 0
        %v414 = vsel %vm373, %v346, 0
        %v417 = vsel %vm373, %v347, 0
        %v420 = vsel %vm373, %v348, 0
        %vm422 = vcmask 1040384
        %v424 = vsel %vm422, %v370, 0
        %426 = vmatpush.bf16.msra.mxu0 0
        %427 = vmatpush.bf16.msra.mxu0 0
        %428 = vmatpush.bf16.msra.mxu0 0
        %429 = vmatpush.bf16.msra.mxu0 0
        %430 = vmatpush.bf16.msra.mxu0 0
        %431 = vmatpush.bf16.msra.mxu0 %v424
        %432 = vmatpush.bf16.msra.mxu0 %v369
        %433 = vmatpush.bf16.msra.mxu0 %v368
        %434 = vmatmul.bf16.gmra.mxu0 %v375
        %v435 = vpop.f32.mrf.mxu0
        %v436 = vadd.f32 %v356, %v435
        %v437 = vpop.f32.mrf.mxu0
        %v438 = vadd.f32 %v356, %v437
        %439 = vmatmul.bf16.gmra.mxu0 %v378
        %v440 = vpop.f32.mrf.mxu0
        %v441 = vadd.f32 %v356, %v440
        %v442 = vpop.f32.mrf.mxu0
        %v443 = vadd.f32 %v356, %v442
        %444 = vmatmul.bf16.gmra.mxu0 %v381
        %v445 = vpop.f32.mrf.mxu0
        %v446 = vadd.f32 %v356, %v445
        %v447 = vpop.f32.mrf.mxu0
        %v448 = vadd.f32 %v356, %v447
        %449 = vmatmul.bf16.gmra.mxu0 %v384
        %v450 = vpop.f32.mrf.mxu0
        %v451 = vadd.f32 %v356, %v450
        %v452 = vpop.f32.mrf.mxu0
        %v453 = vadd.f32 %v356, %v452
        %454 = vmatmul.bf16.gmra.mxu0 %v387
        %v455 = vpop.f32.mrf.mxu0
        %v456 = vadd.f32 %v356, %v455
        %v457 = vpop.f32.mrf.mxu0
        %v458 = vadd.f32 %v356, %v457
        %459 = vmatmul.bf16.gmra.mxu0 %v390
        %v460 = vpop.f32.mrf.mxu0
        %v461 = vadd.f32 %v356, %v460
        %v462 = vpop.f32.mrf.mxu0
        %v463 = vadd.f32 %v356, %v462
        %464 = vmatmul.bf16.gmra.mxu0 %v393
        %v465 = vpop.f32.mrf.mxu0
        %v466 = vadd.f32 %v356, %v465
        %v467 = vpop.f32.mrf.mxu0
        %v468 = vadd.f32 %v356, %v467
        %469 = vmatmul.bf16.gmra.mxu0 %v396
        %v470 = vpop.f32.mrf.mxu0
        %v471 = vadd.f32 %v356, %v470
        %v472 = vpop.f32.mrf.mxu0
        %v473 = vadd.f32 %v356, %v472
        %474 = vmatmul.bf16.gmra.mxu0 %v399
        %v475 = vpop.f32.mrf.mxu0
        %v476 = vadd.f32 %v356, %v475
        %v477 = vpop.f32.mrf.mxu0
        %v478 = vadd.f32 %v356, %v477
        %479 = vmatmul.bf16.gmra.mxu0 %v402
        %v480 = vpop.f32.mrf.mxu0
        %v481 = vadd.f32 %v356, %v480
        %v482 = vpop.f32.mrf.mxu0
        %v483 = vadd.f32 %v356, %v482
        %484 = vmatmul.bf16.gmra.mxu0 %v405
        %v485 = vpop.f32.mrf.mxu0
        %v486 = vadd.f32 %v356, %v485
        %v487 = vpop.f32.mrf.mxu0
        %v488 = vadd.f32 %v356, %v487
        %489 = vmatmul.bf16.gmra.mxu0 %v408
        %v490 = vpop.f32.mrf.mxu0
        %v491 = vadd.f32 %v356, %v490
        %v492 = vpop.f32.mrf.mxu0
        %v493 = vadd.f32 %v356, %v492
        %494 = vmatmul.bf16.gmra.mxu0 %v411
        %v495 = vpop.f32.mrf.mxu0
        %v496 = vadd.f32 %v356, %v495
        %v497 = vpop.f32.mrf.mxu0
        %v498 = vadd.f32 %v356, %v497
        %499 = vmatmul.bf16.gmra.mxu0 %v414
        %v500 = vpop.f32.mrf.mxu0
        %v501 = vadd.f32 %v356, %v500
        %v502 = vpop.f32.mrf.mxu0
        %v503 = vadd.f32 %v356, %v502
        %504 = vmatmul.bf16.gmra.mxu0 %v417
        %v505 = vpop.f32.mrf.mxu0
        %v506 = vadd.f32 %v356, %v505
        %v507 = vpop.f32.mrf.mxu0
        %v508 = vadd.f32 %v356, %v507
        %509 = vmatmul.bf16.gmra.mxu0 %v420
        %v510 = vpop.f32.mrf.mxu0
        %v511 = vadd.f32 %v356, %v510
        %v512 = vpop.f32.mrf.mxu0
        %v513 = vadd.f32 %v356, %v512
        %514 = vdwg.mxu0
        %v515 = vmax.f32 %v436, 0.0
        %v516 = vmax.f32 %v438, 0.0
        %v517 = vmax.f32 %v441, 0.0
        %v518 = vmax.f32 %v443, 0.0
        %v519 = vmax.f32 %v446, 0.0
        %v520 = vmax.f32 %v448, 0.0
        %v521 = vmax.f32 %v451, 0.0
        %v522 = vmax.f32 %v453, 0.0
        %v523 = vmax.f32 %v456, 0.0
        %v524 = vmax.f32 %v458, 0.0
        %v525 = vmax.f32 %v461, 0.0
        %v526 = vmax.f32 %v463, 0.0
        %v527 = vmax.f32 %v466, 0.0
        %v528 = vmax.f32 %v468, 0.0
        %v529 = vmax.f32 %v471, 0.0
        %v530 = vmax.f32 %v473, 0.0
        %v531 = vmax.f32 %v476, 0.0
        %v532 = vmax.f32 %v478, 0.0
        %v533 = vmax.f32 %v481, 0.0
        %v534 = vmax.f32 %v483, 0.0
        %v535 = vmax.f32 %v486, 0.0
        %v536 = vmax.f32 %v488, 0.0
        %v537 = vmax.f32 %v491, 0.0
        %v538 = vmax.f32 %v493, 0.0
        %v539 = vmax.f32 %v496, 0.0
        %v540 = vmax.f32 %v498, 0.0
        %v541 = vmax.f32 %v501, 0.0
        %v542 = vmax.f32 %v503, 0.0
        %v543 = vmax.f32 %v506, 0.0
        %v544 = vmax.f32 %v508, 0.0
        %v545 = vmax.f32 %v511, 0.0
        %v546 = vmax.f32 %v513, 0.0
        %v547 = vpack.c.bf16 %v516, %v515
        %v548 = vpack.c.bf16 %v518, %v517
        %v549 = vpack.c.bf16 %v520, %v519
        %v550 = vpack.c.bf16 %v522, %v521
        %v551 = vpack.c.bf16 %v524, %v523
        %v552 = vpack.c.bf16 %v526, %v525
        %v553 = vpack.c.bf16 %v528, %v527
        %v554 = vpack.c.bf16 %v530, %v529
        %v555 = vpack.c.bf16 %v532, %v531
        %v556 = vpack.c.bf16 %v534, %v533
        %v557 = vpack.c.bf16 %v536, %v535
        %v558 = vpack.c.bf16 %v538, %v537
        %v559 = vpack.c.bf16 %v540, %v539
        %v560 = vpack.c.bf16 %v542, %v541
        %v561 = vpack.c.bf16 %v544, %v543
        %v562 = vpack.c.bf16 %v546, %v545
        %v563 = vld [vmem:[%s3] sm:$0xf]
        %v564 = vld [vmem:[%s3 + $0x4] sm:$0xf]
        %v565 = vld [vmem:[%s3 + $0x8] sm:$0xf]
        %v566 = vld [vmem:[%s3 + $0xc] sm:$0xf]
        %v567 = vld [vmem:[%s3 + $0x10] sm:$0xf]
        %v568 = vld [vmem:[%s3 + $0x14] sm:$0xf]
        %v569 = vld [vmem:[%s3 + $0x18] sm:$0xf]
        %v570 = vld [vmem:[%s3 + $0x1c] sm:$0xf]
        %v571 = vld [vmem:[%s3 + $0x20] sm:$0xf]
        %v572 = vld [vmem:[%s3 + $0x24] sm:$0xf]
        %v573 = vld [vmem:[%s3 + $0x28] sm:$0xf]
        %v574 = vld [vmem:[%s3 + $0x2c] sm:$0xf]
        %v575 = vld [vmem:[%s3 + $0x30] sm:$0xf]
        %v576 = vld [vmem:[%s3 + $0x34] sm:$0xf]
        %v577 = vld [vmem:[%s3 + $0x38] sm:$0xf]
        %v578 = vld [vmem:[%s3 + $0x3c] sm:$0xf]
        %v579 = vld [vmem:[%s4] sm:$0x1]
        %v581 = vperm.slane %v579, 0
        %v599 = vunpack.c.l.b16 %v563
        %v600 = vunpack.c.l.b16 %v564
        %v601 = vunpack.c.l.b16 %v565
        %v602 = vunpack.c.l.b16 %v566
        %v603 = vunpack.c.l.b16 %v567
        %v604 = vunpack.c.l.b16 %v568
        %v605 = vunpack.c.l.b16 %v569
        %v606 = vunpack.c.l.b16 %v570
        %v607 = vunpack.c.l.b16 %v571
        %v608 = vunpack.c.l.b16 %v572
        %v609 = vunpack.c.l.b16 %v573
        %v610 = vunpack.c.l.b16 %v574
        %v611 = vunpack.c.l.b16 %v575
        %v612 = vunpack.c.l.b16 %v576
        %v613 = vunpack.c.l.b16 %v577
        %v614 = vunpack.c.l.b16 %v578
        %v615 = vpack.c.b16 %v600, %v599
        %v616 = vpack.c.b16 %v602, %v601
        %v617 = vpack.c.b16 %v604, %v603
        %v618 = vpack.c.b16 %v606, %v605
        %v619 = vpack.c.b16 %v608, %v607
        %v620 = vpack.c.b16 %v610, %v609
        %v621 = vpack.c.b16 %v612, %v611
        %v622 = vpack.c.b16 %v614, %v613
        %631 = vmatpush.bf16.msra.mxu0 %v622
        %632 = vmatpush.bf16.msra.mxu0 %v621
        %633 = vmatpush.bf16.msra.mxu0 %v620
        %634 = vmatpush.bf16.msra.mxu0 %v619
        %635 = vmatpush.bf16.msra.mxu0 %v618
        %636 = vmatpush.bf16.msra.mxu0 %v617
        %637 = vmatpush.bf16.msra.mxu0 %v616
        %638 = vmatpush.bf16.msra.mxu0 %v615
        %639 = vmatmul.bf16.gmra.mxu0 %v547
        %v640 = vpop.f32.mrf.mxu0
        %v641 = vadd.f32 %v581, %v640
        %v642 = vpop.f32.mrf.mxu0
        %v643 = vadd.f32 %v581, %v642
        %644 = vmatmul.bf16.gmra.mxu0 %v548
        %v645 = vpop.f32.mrf.mxu0
        %v646 = vadd.f32 %v581, %v645
        %v647 = vpop.f32.mrf.mxu0
        %v648 = vadd.f32 %v581, %v647
        %649 = vmatmul.bf16.gmra.mxu0 %v549
        %v650 = vpop.f32.mrf.mxu0
        %v651 = vadd.f32 %v581, %v650
        %v652 = vpop.f32.mrf.mxu0
        %v653 = vadd.f32 %v581, %v652
        %654 = vmatmul.bf16.gmra.mxu0 %v550
        %v655 = vpop.f32.mrf.mxu0
        %v656 = vadd.f32 %v581, %v655
        %v657 = vpop.f32.mrf.mxu0
        %v658 = vadd.f32 %v581, %v657
        %659 = vmatmul.bf16.gmra.mxu0 %v551
        %v660 = vpop.f32.mrf.mxu0
        %v661 = vadd.f32 %v581, %v660
        %v662 = vpop.f32.mrf.mxu0
        %v663 = vadd.f32 %v581, %v662
        %664 = vmatmul.bf16.gmra.mxu0 %v552
        %v665 = vpop.f32.mrf.mxu0
        %v666 = vadd.f32 %v581, %v665
        %v667 = vpop.f32.mrf.mxu0
        %v668 = vadd.f32 %v581, %v667
        %669 = vmatmul.bf16.gmra.mxu0 %v553
        %v670 = vpop.f32.mrf.mxu0
        %v671 = vadd.f32 %v581, %v670
        %v672 = vpop.f32.mrf.mxu0
        %v673 = vadd.f32 %v581, %v672
        %674 = vmatmul.bf16.gmra.mxu0 %v554
        %v675 = vpop.f32.mrf.mxu0
        %v676 = vadd.f32 %v581, %v675
        %v677 = vpop.f32.mrf.mxu0
        %v678 = vadd.f32 %v581, %v677
        %679 = vmatmul.bf16.gmra.mxu0 %v555
        %v680 = vpop.f32.mrf.mxu0
        %v681 = vadd.f32 %v581, %v680
        %v682 = vpop.f32.mrf.mxu0
        %v683 = vadd.f32 %v581, %v682
        %684 = vmatmul.bf16.gmra.mxu0 %v556
        %v685 = vpop.f32.mrf.mxu0
        %v686 = vadd.f32 %v581, %v685
        %v687 = vpop.f32.mrf.mxu0
        %v688 = vadd.f32 %v581, %v687
        %689 = vmatmul.bf16.gmra.mxu0 %v557
        %v690 = vpop.f32.mrf.mxu0
        %v691 = vadd.f32 %v581, %v690
        %v692 = vpop.f32.mrf.mxu0
        %v693 = vadd.f32 %v581, %v692
        %694 = vmatmul.bf16.gmra.mxu0 %v558
        %v695 = vpop.f32.mrf.mxu0
        %v696 = vadd.f32 %v581, %v695
        %v697 = vpop.f32.mrf.mxu0
        %v698 = vadd.f32 %v581, %v697
        %699 = vmatmul.bf16.gmra.mxu0 %v559
        %v700 = vpop.f32.mrf.mxu0
        %v701 = vadd.f32 %v581, %v700
        %v702 = vpop.f32.mrf.mxu0
        %v703 = vadd.f32 %v581, %v702
        %704 = vmatmul.bf16.gmra.mxu0 %v560
        %v705 = vpop.f32.mrf.mxu0
        %v706 = vadd.f32 %v581, %v705
        %v707 = vpop.f32.mrf.mxu0
        %v708 = vadd.f32 %v581, %v707
        %709 = vmatmul.bf16.gmra.mxu0 %v561
        %v710 = vpop.f32.mrf.mxu0
        %v711 = vadd.f32 %v581, %v710
        %v712 = vpop.f32.mrf.mxu0
        %v713 = vadd.f32 %v581, %v712
        %714 = vmatmul.bf16.gmra.mxu0 %v562
        %v715 = vpop.f32.mrf.mxu0
        %v716 = vadd.f32 %v581, %v715
        %v717 = vpop.f32.mrf.mxu0
        %v718 = vadd.f32 %v581, %v717
        %719 = vdwg.mxu0
        %v720 = vmax.f32 %v641, 0.0
        %v721 = vmax.f32 %v643, 0.0
        %v722 = vmax.f32 %v646, 0.0
        %v723 = vmax.f32 %v648, 0.0
        %v724 = vmax.f32 %v651, 0.0
        %v725 = vmax.f32 %v653, 0.0
        %v726 = vmax.f32 %v656, 0.0
        %v727 = vmax.f32 %v658, 0.0
        %v728 = vmax.f32 %v661, 0.0
        %v729 = vmax.f32 %v663, 0.0
        %v730 = vmax.f32 %v666, 0.0
        %v731 = vmax.f32 %v668, 0.0
        %v732 = vmax.f32 %v671, 0.0
        %v733 = vmax.f32 %v673, 0.0
        %v734 = vmax.f32 %v676, 0.0
        %v735 = vmax.f32 %v678, 0.0
        %v736 = vmax.f32 %v681, 0.0
        %v737 = vmax.f32 %v683, 0.0
        %v738 = vmax.f32 %v686, 0.0
        %v739 = vmax.f32 %v688, 0.0
        %v740 = vmax.f32 %v691, 0.0
        %v741 = vmax.f32 %v693, 0.0
        %v742 = vmax.f32 %v696, 0.0
        %v743 = vmax.f32 %v698, 0.0
        %v744 = vmax.f32 %v701, 0.0
        %v745 = vmax.f32 %v703, 0.0
        %v746 = vmax.f32 %v706, 0.0
        %v747 = vmax.f32 %v708, 0.0
        %v748 = vmax.f32 %v711, 0.0
        %v749 = vmax.f32 %v713, 0.0
        %v750 = vmax.f32 %v716, 0.0
        %v751 = vmax.f32 %v718, 0.0
        %v752 = vpack.c.bf16 %v721, %v720
        %v753 = vpack.c.bf16 %v723, %v722
        %v754 = vpack.c.bf16 %v725, %v724
        %v755 = vpack.c.bf16 %v727, %v726
        %v756 = vpack.c.bf16 %v729, %v728
        %v757 = vpack.c.bf16 %v731, %v730
        %v758 = vpack.c.bf16 %v733, %v732
        %v759 = vpack.c.bf16 %v735, %v734
        %v760 = vpack.c.bf16 %v737, %v736
        %v761 = vpack.c.bf16 %v739, %v738
        %v762 = vpack.c.bf16 %v741, %v740
        %v763 = vpack.c.bf16 %v743, %v742
        %v764 = vpack.c.bf16 %v745, %v744
        %v765 = vpack.c.bf16 %v747, %v746
        %v766 = vpack.c.bf16 %v749, %v748
        %v767 = vpack.c.bf16 %v751, %v750
        %v768 = vld [vmem:[%s5] sm:$0xf]
        %v769 = vld [vmem:[%s5 + $0x4] sm:$0xf]
        %v770 = vld [vmem:[%s5 + $0x8] sm:$0xf]
        %v771 = vld [vmem:[%s5 + $0xc] sm:$0xf]
        %v772 = vld [vmem:[%s5 + $0x10] sm:$0xf]
        %v773 = vld [vmem:[%s5 + $0x14] sm:$0xf]
        %v774 = vld [vmem:[%s5 + $0x18] sm:$0xf]
        %v775 = vld [vmem:[%s5 + $0x1c] sm:$0xf]
        %v776 = vld [vmem:[%s5 + $0x20] sm:$0xf]
        %v777 = vld [vmem:[%s5 + $0x24] sm:$0xf]
        %v778 = vld [vmem:[%s5 + $0x28] sm:$0xf]
        %v779 = vld [vmem:[%s5 + $0x2c] sm:$0xf]
        %v780 = vld [vmem:[%s5 + $0x30] sm:$0xf]
        %v781 = vld [vmem:[%s5 + $0x34] sm:$0xf]
        %v782 = vld [vmem:[%s5 + $0x38] sm:$0xf]
        %v783 = vld [vmem:[%s5 + $0x3c] sm:$0xf]
        %v784 = vld [vmem:[%s6] sm:$0x1]
        %v786 = vperm.slane %v784, 0
        %v804 = vunpack.c.l.b16 %v768
        %v805 = vunpack.c.l.b16 %v769
        %v806 = vunpack.c.l.b16 %v770
        %v807 = vunpack.c.l.b16 %v771
        %v808 = vunpack.c.l.b16 %v772
        %v809 = vunpack.c.l.b16 %v773
        %v810 = vunpack.c.l.b16 %v774
        %v811 = vunpack.c.l.b16 %v775
        %v812 = vunpack.c.l.b16 %v776
        %v813 = vunpack.c.l.b16 %v777
        %v814 = vunpack.c.l.b16 %v778
        %v815 = vunpack.c.l.b16 %v779
        %v816 = vunpack.c.l.b16 %v780
        %v817 = vunpack.c.l.b16 %v781
        %v818 = vunpack.c.l.b16 %v782
        %v819 = vunpack.c.l.b16 %v783
        %v820 = vpack.c.b16 %v805, %v804
        %v821 = vpack.c.b16 %v807, %v806
        %v822 = vpack.c.b16 %v809, %v808
        %v823 = vpack.c.b16 %v811, %v810
        %v824 = vpack.c.b16 %v813, %v812
        %v825 = vpack.c.b16 %v815, %v814
        %v826 = vpack.c.b16 %v817, %v816
        %v827 = vpack.c.b16 %v819, %v818
        %836 = vmatpush.bf16.msra.mxu0 %v827
        %837 = vmatpush.bf16.msra.mxu0 %v826
        %838 = vmatpush.bf16.msra.mxu0 %v825
        %839 = vmatpush.bf16.msra.mxu0 %v824
        %840 = vmatpush.bf16.msra.mxu0 %v823
        %841 = vmatpush.bf16.msra.mxu0 %v822
        %842 = vmatpush.bf16.msra.mxu0 %v821
        %843 = vmatpush.bf16.msra.mxu0 %v820
        %844 = vmatmul.bf16.gmra.mxu0 %v752
        %v845 = vpop.f32.mrf.mxu0
        %v846 = vadd.f32 %v786, %v845
        %v847 = vpop.f32.mrf.mxu0
        %v848 = vadd.f32 %v786, %v847
        %849 = vmatmul.bf16.gmra.mxu0 %v753
        %v850 = vpop.f32.mrf.mxu0
        %v851 = vadd.f32 %v786, %v850
        %v852 = vpop.f32.mrf.mxu0
        %v853 = vadd.f32 %v786, %v852
        %854 = vmatmul.bf16.gmra.mxu0 %v754
        %v855 = vpop.f32.mrf.mxu0
        %v856 = vadd.f32 %v786, %v855
        %v857 = vpop.f32.mrf.mxu0
        %v858 = vadd.f32 %v786, %v857
        %859 = vmatmul.bf16.gmra.mxu0 %v755
        %v860 = vpop.f32.mrf.mxu0
        %v861 = vadd.f32 %v786, %v860
        %v862 = vpop.f32.mrf.mxu0
        %v863 = vadd.f32 %v786, %v862
        %864 = vmatmul.bf16.gmra.mxu0 %v756
        %v865 = vpop.f32.mrf.mxu0
        %v866 = vadd.f32 %v786, %v865
        %v867 = vpop.f32.mrf.mxu0
        %v868 = vadd.f32 %v786, %v867
        %869 = vmatmul.bf16.gmra.mxu0 %v757
        %v870 = vpop.f32.mrf.mxu0
        %v871 = vadd.f32 %v786, %v870
        %v872 = vpop.f32.mrf.mxu0
        %v873 = vadd.f32 %v786, %v872
        %874 = vmatmul.bf16.gmra.mxu0 %v758
        %v875 = vpop.f32.mrf.mxu0
        %v876 = vadd.f32 %v786, %v875
        %v877 = vpop.f32.mrf.mxu0
        %v878 = vadd.f32 %v786, %v877
        %879 = vmatmul.bf16.gmra.mxu0 %v759
        %v880 = vpop.f32.mrf.mxu0
        %v881 = vadd.f32 %v786, %v880
        %v882 = vpop.f32.mrf.mxu0
        %v883 = vadd.f32 %v786, %v882
        %884 = vmatmul.bf16.gmra.mxu0 %v760
        %v885 = vpop.f32.mrf.mxu0
        %v886 = vadd.f32 %v786, %v885
        %v887 = vpop.f32.mrf.mxu0
        %v888 = vadd.f32 %v786, %v887
        %889 = vmatmul.bf16.gmra.mxu0 %v761
        %v890 = vpop.f32.mrf.mxu0
        %v891 = vadd.f32 %v786, %v890
        %v892 = vpop.f32.mrf.mxu0
        %v893 = vadd.f32 %v786, %v892
        %894 = vmatmul.bf16.gmra.mxu0 %v762
        %v895 = vpop.f32.mrf.mxu0
        %v896 = vadd.f32 %v786, %v895
        %v897 = vpop.f32.mrf.mxu0
        %v898 = vadd.f32 %v786, %v897
        %899 = vmatmul.bf16.gmra.mxu0 %v763
        %v900 = vpop.f32.mrf.mxu0
        %v901 = vadd.f32 %v786, %v900
        %v902 = vpop.f32.mrf.mxu0
        %v903 = vadd.f32 %v786, %v902
        %904 = vmatmul.bf16.gmra.mxu0 %v764
        %v905 = vpop.f32.mrf.mxu0
        %v906 = vadd.f32 %v786, %v905
        %v907 = vpop.f32.mrf.mxu0
        %v908 = vadd.f32 %v786, %v907
        %909 = vmatmul.bf16.gmra.mxu0 %v765
        %v910 = vpop.f32.mrf.mxu0
        %v911 = vadd.f32 %v786, %v910
        %v912 = vpop.f32.mrf.mxu0
        %v913 = vadd.f32 %v786, %v912
        %914 = vmatmul.bf16.gmra.mxu0 %v766
        %v915 = vpop.f32.mrf.mxu0
        %v916 = vadd.f32 %v786, %v915
        %v917 = vpop.f32.mrf.mxu0
        %v918 = vadd.f32 %v786, %v917
        %919 = vmatmul.bf16.gmra.mxu0 %v767
        %v920 = vpop.f32.mrf.mxu0
        %v921 = vadd.f32 %v786, %v920
        %v922 = vpop.f32.mrf.mxu0
        %v923 = vadd.f32 %v786, %v922
        %924 = vdwg.mxu0
        %vm925 = vcmask 64512
        %926 = vst.msk [vmem:[%s280] sm:$0xff] %vm925, %v846
        %927 = vst.msk [vmem:[%s280 + $0x8] sm:$0xff] %vm925, %v848
        %928 = vst.msk [vmem:[%s280 + $0x10] sm:$0xff] %vm925, %v851
        %929 = vst.msk [vmem:[%s280 + $0x18] sm:$0xff] %vm925, %v853
        %930 = vst.msk [vmem:[%s280 + $0x20] sm:$0xff] %vm925, %v856
        %931 = vst.msk [vmem:[%s280 + $0x28] sm:$0xff] %vm925, %v858
        %932 = vst.msk [vmem:[%s280 + $0x30] sm:$0xff] %vm925, %v861
        %933 = vst.msk [vmem:[%s280 + $0x38] sm:$0xff] %vm925, %v863
        %934 = vst.msk [vmem:[%s280 + $0x40] sm:$0xff] %vm925, %v866
        %935 = vst.msk [vmem:[%s280 + $0x48] sm:$0xff] %vm925, %v868
        %936 = vst.msk [vmem:[%s280 + $0x50] sm:$0xff] %vm925, %v871
        %937 = vst.msk [vmem:[%s280 + $0x58] sm:$0xff] %vm925, %v873
        %938 = vst.msk [vmem:[%s280 + $0x60] sm:$0xff] %vm925, %v876
        %939 = vst.msk [vmem:[%s280 + $0x68] sm:$0xff] %vm925, %v878
        %940 = vst.msk [vmem:[%s280 + $0x70] sm:$0xff] %vm925, %v881
        %941 = vst.msk [vmem:[%s280 + $0x78] sm:$0xff] %vm925, %v883
        %942 = vst.msk [vmem:[%s280 + $0x80] sm:$0xff] %vm925, %v886
        %943 = vst.msk [vmem:[%s280 + $0x88] sm:$0xff] %vm925, %v888
        %944 = vst.msk [vmem:[%s280 + $0x90] sm:$0xff] %vm925, %v891
        %945 = vst.msk [vmem:[%s280 + $0x98] sm:$0xff] %vm925, %v893
        %946 = vst.msk [vmem:[%s280 + $0xa0] sm:$0xff] %vm925, %v896
        %947 = vst.msk [vmem:[%s280 + $0xa8] sm:$0xff] %vm925, %v898
        %948 = vst.msk [vmem:[%s280 + $0xb0] sm:$0xff] %vm925, %v901
        %949 = vst.msk [vmem:[%s280 + $0xb8] sm:$0xff] %vm925, %v903
        %950 = vst.msk [vmem:[%s280 + $0xc0] sm:$0xff] %vm925, %v906
        %951 = vst.msk [vmem:[%s280 + $0xc8] sm:$0xff] %vm925, %v908
        %952 = vst.msk [vmem:[%s280 + $0xd0] sm:$0xff] %vm925, %v911
        %953 = vst.msk [vmem:[%s280 + $0xd8] sm:$0xff] %vm925, %v913
        %954 = vst.msk [vmem:[%s280 + $0xe0] sm:$0xff] %vm925, %v916
        %955 = vst.msk [vmem:[%s280 + $0xe8] sm:$0xff] %vm925, %v918
        %956 = vst.msk [vmem:[%s280 + $0xf0] sm:$0xff] %vm925, %v921
        %957 = vst.msk [vmem:[%s280 + $0xf8] sm:$0xff] %vm925, %v923
        %s958 = sand.u32 %s178, 1
        %s959 = sand.u32 %s178, 1
        %s960 = smul.addr %s959, 256
        %s961 = scalar_lea.vmem [#allocation2], %s960
        // Predicated region
        $region49: #{tpu_custom_call.1} parent=47 // pred_check
          %p962 = pneg %p188
        $region50: #{tpu_custom_call.1} parent=47 // pred_check_branch
          %964 = sbr.rel (%p962) target = $region52
        $region51: #{tpu_custom_call.1} parent=47 // pred_region
          %s965 = smul.u32 32, %s18
          %s966 = ssub.s32 38, %s965
          %p967 = scmp.lt.s32.totalorder %s966, 32
          %s968 = scalar_select %p967, %s966, 32
          %s969 = smul.u32 8, %s968
          %p970 = scmp.ne.s32.totalorder 0, %s969
          %s971 = smul.addr %s965, 8
          %s972 = scalar_lea.vmem %s7, %s971
          // Predicated region
          $region53: #{tpu_custom_call.1} parent=51 // pred_check
            %p973 = pneg %p970
          $region54: #{tpu_custom_call.1} parent=51 // pred_check_branch
            %975 = sbr.rel (%p973) target = $region56
          $region55: #{tpu_custom_call.1} parent=51 // pred_region
            // Predicated region
            $region57: #{tpu_custom_call.1} parent=55 // pred_check
              _
            $region58: #{tpu_custom_call.1} parent=55 // pred_check_branch
              %977 = sbr.rel (0) target = $region60
            $region59: #{tpu_custom_call.1} parent=55 // pred_region
              // Predicated region
              $region79: #{tpu_custom_call.1} parent=59 // pred_check
                _
              $region80: #{tpu_custom_call.1} parent=59 // pred_check_branch
                %1089 = sbr.rel (0) target = $region82
              $region81: #{tpu_custom_call.1} parent=59 // pred_region
                %s1090 = sshrl.u32 %s968, 5
                // While loop
                $region83: #{tpu_custom_call.1} parent=81 // loop_pre_header
                  _
                $region84: #{tpu_custom_call.1} parent=81 // loop_header
                  %s1092 = sphi 0, %s1094
                  %p1093 = scmp.ge.s32.totalorder %s1092, %s1090
                  %s1097 = sphi 0, %s1166
                  %s1098 = sphi %s961, %s1169
                  %s1099 = sphi %s972, %s1170
                $region85: #{tpu_custom_call.1} parent=81 // loop_header_branch
                  %1096 = sbr.rel (%p1093) target = $region89
                $region86: #{tpu_custom_call.1} parent=81 // loop_body
                  %v1100 = vld [vmem:[%s1098] sm:$0xff]
                  %1101 = vst [vmem:[%s1099] sm:$0xff] %v1100
                  %v1102 = vld [vmem:[%s1098 + $0x8] sm:$0xff]
                  %1103 = vst [vmem:[%s1099 + $0x8] sm:$0xff] %v1102
                  %v1104 = vld [vmem:[%s1098 + $0x10] sm:$0xff]
                  %1105 = vst [vmem:[%s1099 + $0x10] sm:$0xff] %v1104
                  %v1106 = vld [vmem:[%s1098 + $0x18] sm:$0xff]
                  %1107 = vst [vmem:[%s1099 + $0x18] sm:$0xff] %v1106
                  %v1108 = vld [vmem:[%s1098 + $0x20] sm:$0xff]
                  %1109 = vst [vmem:[%s1099 + $0x20] sm:$0xff] %v1108
                  %v1110 = vld [vmem:[%s1098 + $0x28] sm:$0xff]
                  %1111 = vst [vmem:[%s1099 + $0x28] sm:$0xff] %v1110
                  %v1112 = vld [vmem:[%s1098 + $0x30] sm:$0xff]
                  %1113 = vst [vmem:[%s1099 + $0x30] sm:$0xff] %v1112
                  %v1114 = vld [vmem:[%s1098 + $0x38] sm:$0xff]
                  %1115 = vst [vmem:[%s1099 + $0x38] sm:$0xff] %v1114
                  %v1116 = vld [vmem:[%s1098 + $0x40] sm:$0xff]
                  %1117 = vst [vmem:[%s1099 + $0x40] sm:$0xff] %v1116
                  %v1118 = vld [vmem:[%s1098 + $0x48] sm:$0xff]
                  %1119 = vst [vmem:[%s1099 + $0x48] sm:$0xff] %v1118
                  %v1120 = vld [vmem:[%s1098 + $0x50] sm:$0xff]
                  %1121 = vst [vmem:[%s1099 + $0x50] sm:$0xff] %v1120
                  %v1122 = vld [vmem:[%s1098 + $0x58] sm:$0xff]
                  %1123 = vst [vmem:[%s1099 + $0x58] sm:$0xff] %v1122
                  %v1124 = vld [vmem:[%s1098 + $0x60] sm:$0xff]
                  %1125 = vst [vmem:[%s1099 + $0x60] sm:$0xff] %v1124
                  %v1126 = vld [vmem:[%s1098 + $0x68] sm:$0xff]
                  %1127 = vst [vmem:[%s1099 + $0x68] sm:$0xff] %v1126
                  %v1128 = vld [vmem:[%s1098 + $0x70] sm:$0xff]
                  %1129 = vst [vmem:[%s1099 + $0x70] sm:$0xff] %v1128
                  %v1130 = vld [vmem:[%s1098 + $0x78] sm:$0xff]
                  %1131 = vst [vmem:[%s1099 + $0x78] sm:$0xff] %v1130
                  %v1132 = vld [vmem:[%s1098 + $0x80] sm:$0xff]
                  %1133 = vst [vmem:[%s1099 + $0x80] sm:$0xff] %v1132
                  %v1134 = vld [vmem:[%s1098 + $0x88] sm:$0xff]
                  %1135 = vst [vmem:[%s1099 + $0x88] sm:$0xff] %v1134
                  %v1136 = vld [vmem:[%s1098 + $0x90] sm:$0xff]
                  %1137 = vst [vmem:[%s1099 + $0x90] sm:$0xff] %v1136
                  %v1138 = vld [vmem:[%s1098 + $0x98] sm:$0xff]
                  %1139 = vst [vmem:[%s1099 + $0x98] sm:$0xff] %v1138
                  %v1140 = vld [vmem:[%s1098 + $0xa0] sm:$0xff]
                  %1141 = vst [vmem:[%s1099 + $0xa0] sm:$0xff] %v1140
                  %v1142 = vld [vmem:[%s1098 + $0xa8] sm:$0xff]
                  %1143 = vst [vmem:[%s1099 + $0xa8] sm:$0xff] %v1142
                  %v1144 = vld [vmem:[%s1098 + $0xb0] sm:$0xff]
                  %1145 = vst [vmem:[%s1099 + $0xb0] sm:$0xff] %v1144
                  %v1146 = vld [vmem:[%s1098 + $0xb8] sm:$0xff]
                  %1147 = vst [vmem:[%s1099 + $0xb8] sm:$0xff] %v1146
                  %v1148 = vld [vmem:[%s1098 + $0xc0] sm:$0xff]
                  %1149 = vst [vmem:[%s1099 + $0xc0] sm:$0xff] %v1148
                  %v1150 = vld [vmem:[%s1098 + $0xc8] sm:$0xff]
                  %1151 = vst [vmem:[%s1099 + $0xc8] sm:$0xff] %v1150
                  %v1152 = vld [vmem:[%s1098 + $0xd0] sm:$0xff]
                  %1153 = vst [vmem:[%s1099 + $0xd0] sm:$0xff] %v1152
                  %v1154 = vld [vmem:[%s1098 + $0xd8] sm:$0xff]
                  %1155 = vst [vmem:[%s1099 + $0xd8] sm:$0xff] %v1154
                  %v1156 = vld [vmem:[%s1098 + $0xe0] sm:$0xff]
                  %1157 = vst [vmem:[%s1099 + $0xe0] sm:$0xff] %v1156
                  %v1158 = vld [vmem:[%s1098 + $0xe8] sm:$0xff]
                  %1159 = vst [vmem:[%s1099 + $0xe8] sm:$0xff] %v1158
                  %v1160 = vld [vmem:[%s1098 + $0xf0] sm:$0xff]
                  %1161 = vst [vmem:[%s1099 + $0xf0] sm:$0xff] %v1160
                  %v1162 = vld [vmem:[%s1098 + $0xf8] sm:$0xff]
                  %1163 = vst [vmem:[%s1099 + $0xf8] sm:$0xff] %v1162
                  %s1164 = sadd.s32 1, %s1097
                  %p1165 = scmp.ge.s32.totalorder %s1164, %s1090
                  %s1166 = scalar_select %p1165, 0, %s1164
                  %s1167 = smul.u32 %s1166, 256
                  %s1168 = smul.u32 %s1166, 256
                  %s1169 = scalar_lea.vmem %s961, %s1167 [#allocation2]
                  %s1170 = scalar_lea.vmem %s972, %s1168
                $region87: #{tpu_custom_call.1} parent=81 // loop_footer
                  %s1094 = sadd.s32 %s1092, 1
                $region88: #{tpu_custom_call.1} parent=81 // loop_footer_branch
                  %1091 = sbr.rel target = $region84
                $region89: #{tpu_custom_call.1} parent=81 // loop_exit
                  _
                %s1171 = sshrl.u32 %s968, 5
                %s1172 = sand.u32 %s968, 31
                %s1173 = smul.u32 %s1171, 32
                %s1174 = smul.u32 8, %s1173
                %s1175 = scalar_lea.vmem %s961, %s1174 [#allocation2]
                %s1176 = smul.u32 8, %s1173
                %s1177 = scalar_lea.vmem %s972, %s1176
                // While loop
                $region90: #{tpu_custom_call.1} parent=81 // loop_pre_header
                  _
                $region91: #{tpu_custom_call.1} parent=81 // loop_header
                  %s1179 = sphi 0, %s1181
                  %p1180 = scmp.ge.s32.totalorder %s1179, %s1172
                  %s1184 = sphi 0, %s1191
                  %s1185 = sphi %s1175, %s1194
                  %s1186 = sphi %s1177, %s1195
                $region92: #{tpu_custom_call.1} parent=81 // loop_header_branch
                  %1183 = sbr.rel (%p1180) target = $region96
                $region93: #{tpu_custom_call.1} parent=81 // loop_body
                  %v1187 = vld [vmem:[%s1185] sm:$0xff]
                  %1188 = vst [vmem:[%s1186] sm:$0xff] %v1187
                  %s1189 = sadd.s32 1, %s1184
                  %p1190 = scmp.ge.s32.totalorder %s1189, %s1172
                  %s1191 = scalar_select %p1190, 0, %s1189
                  %s1192 = smul.u32 %s1191, 8
                  %s1193 = smul.u32 %s1191, 8
                  %s1194 = scalar_lea.vmem %s1175, %s1192 [#allocation2]
                  %s1195 = scalar_lea.vmem %s1177, %s1193
                $region94: #{tpu_custom_call.1} parent=81 // loop_footer
                  %s1181 = sadd.s32 %s1179, 1
                $region95: #{tpu_custom_call.1} parent=81 // loop_footer_branch
                  %1178 = sbr.rel target = $region91
                $region96: #{tpu_custom_call.1} parent=81 // loop_exit
                  _
              $region82: #{tpu_custom_call.1} parent=59 // pred_fallthru
                _
              // Predicated region
              $region97: #{tpu_custom_call.1} parent=59 // pred_check
                _
              $region98: #{tpu_custom_call.1} parent=59 // pred_check_branch
                %1197 = sbr.rel target = $region100
              $region99: #{tpu_custom_call.1} parent=59 // pred_region
                _
              $region100: #{tpu_custom_call.1} parent=59 // pred_fallthru
                _
            $region60: #{tpu_custom_call.1} parent=55 // pred_fallthru
              _
            // Predicated region
            $region61: #{tpu_custom_call.1} parent=55 // pred_check
              _
            $region62: #{tpu_custom_call.1} parent=55 // pred_check_branch
              %979 = sbr.rel target = $region64
            $region63: #{tpu_custom_call.1} parent=55 // pred_region
              %s981 = ssub.s32 256, 1
              %s982 = sshrl.u32 %s968, 5
              // While loop
              $region65: #{tpu_custom_call.1} parent=63 // loop_pre_header
                _
              $region66: #{tpu_custom_call.1} parent=63 // loop_header
                %s984 = sphi 0, %s986
                %p985 = scmp.ge.s32.totalorder %s984, %s982
                %s989 = sphi 0, %s1058
                %s990 = sphi %s961, %s1061
                %s991 = sphi %s972, %s1062
              $region67: #{tpu_custom_call.1} parent=63 // loop_header_branch
                %988 = sbr.rel (%p985) target = $region71
              $region68: #{tpu_custom_call.1} parent=63 // loop_body
                %v992 = vld [vmem:[%s990] sm:%s981]
                %993 = vst [vmem:[%s991] sm:%s981] %v992
                %v994 = vld [vmem:[%s990 + $0x8] sm:%s981]
                %995 = vst [vmem:[%s991 + $0x8] sm:%s981] %v994
                %v996 = vld [vmem:[%s990 + $0x10] sm:%s981]
                %997 = vst [vmem:[%s991 + $0x10] sm:%s981] %v996
                %v998 = vld [vmem:[%s990 + $0x18] sm:%s981]
                %999 = vst [vmem:[%s991 + $0x18] sm:%s981] %v998
                %v1000 = vld [vmem:[%s990 + $0x20] sm:%s981]
                %1001 = vst [vmem:[%s991 + $0x20] sm:%s981] %v1000
                %v1002 = vld [vmem:[%s990 + $0x28] sm:%s981]
                %1003 = vst [vmem:[%s991 + $0x28] sm:%s981] %v1002
                %v1004 = vld [vmem:[%s990 + $0x30] sm:%s981]
                %1005 = vst [vmem:[%s991 + $0x30] sm:%s981] %v1004
                %v1006 = vld [vmem:[%s990 + $0x38] sm:%s981]
                %1007 = vst [vmem:[%s991 + $0x38] sm:%s981] %v1006
                %v1008 = vld [vmem:[%s990 + $0x40] sm:%s981]
                %1009 = vst [vmem:[%s991 + $0x40] sm:%s981] %v1008
                %v1010 = vld [vmem:[%s990 + $0x48] sm:%s981]
                %1011 = vst [vmem:[%s991 + $0x48] sm:%s981] %v1010
                %v1012 = vld [vmem:[%s990 + $0x50] sm:%s981]
                %1013 = vst [vmem:[%s991 + $0x50] sm:%s981] %v1012
                %v1014 = vld [vmem:[%s990 + $0x58] sm:%s981]
                %1015 = vst [vmem:[%s991 + $0x58] sm:%s981] %v1014
                %v1016 = vld [vmem:[%s990 + $0x60] sm:%s981]
                %1017 = vst [vmem:[%s991 + $0x60] sm:%s981] %v1016
                %v1018 = vld [vmem:[%s990 + $0x68] sm:%s981]
                %1019 = vst [vmem:[%s991 + $0x68] sm:%s981] %v1018
                %v1020 = vld [vmem:[%s990 + $0x70] sm:%s981]
                %1021 = vst [vmem:[%s991 + $0x70] sm:%s981] %v1020
                %v1022 = vld [vmem:[%s990 + $0x78] sm:%s981]
                %1023 = vst [vmem:[%s991 + $0x78] sm:%s981] %v1022
                %v1024 = vld [vmem:[%s990 + $0x80] sm:%s981]
                %1025 = vst [vmem:[%s991 + $0x80] sm:%s981] %v1024
                %v1026 = vld [vmem:[%s990 + $0x88] sm:%s981]
                %1027 = vst [vmem:[%s991 + $0x88] sm:%s981] %v1026
                %v1028 = vld [vmem:[%s990 + $0x90] sm:%s981]
                %1029 = vst [vmem:[%s991 + $0x90] sm:%s981] %v1028
                %v1030 = vld [vmem:[%s990 + $0x98] sm:%s981]
                %1031 = vst [vmem:[%s991 + $0x98] sm:%s981] %v1030
                %v1032 = vld [vmem:[%s990 + $0xa0] sm:%s981]
                %1033 = vst [vmem:[%s991 + $0xa0] sm:%s981] %v1032
                %v1034 = vld [vmem:[%s990 + $0xa8] sm:%s981]
                %1035 = vst [vmem:[%s991 + $0xa8] sm:%s981] %v1034
                %v1036 = vld [vmem:[%s990 + $0xb0] sm:%s981]
                %1037 = vst [vmem:[%s991 + $0xb0] sm:%s981] %v1036
                %v1038 = vld [vmem:[%s990 + $0xb8] sm:%s981]
                %1039 = vst [vmem:[%s991 + $0xb8] sm:%s981] %v1038
                %v1040 = vld [vmem:[%s990 + $0xc0] sm:%s981]
                %1041 = vst [vmem:[%s991 + $0xc0] sm:%s981] %v1040
                %v1042 = vld [vmem:[%s990 + $0xc8] sm:%s981]
                %1043 = vst [vmem:[%s991 + $0xc8] sm:%s981] %v1042
                %v1044 = vld [vmem:[%s990 + $0xd0] sm:%s981]
                %1045 = vst [vmem:[%s991 + $0xd0] sm:%s981] %v1044
                %v1046 = vld [vmem:[%s990 + $0xd8] sm:%s981]
                %1047 = vst [vmem:[%s991 + $0xd8] sm:%s981] %v1046
                %v1048 = vld [vmem:[%s990 + $0xe0] sm:%s981]
                %1049 = vst [vmem:[%s991 + $0xe0] sm:%s981] %v1048
                %v1050 = vld [vmem:[%s990 + $0xe8] sm:%s981]
                %1051 = vst [vmem:[%s991 + $0xe8] sm:%s981] %v1050
                %v1052 = vld [vmem:[%s990 + $0xf0] sm:%s981]
                %1053 = vst [vmem:[%s991 + $0xf0] sm:%s981] %v1052
                %v1054 = vld [vmem:[%s990 + $0xf8] sm:%s981]
                %1055 = vst [vmem:[%s991 + $0xf8] sm:%s981] %v1054
                %s1056 = sadd.s32 1, %s989
                %p1057 = scmp.ge.s32.totalorder %s1056, %s982
                %s1058 = scalar_select %p1057, 0, %s1056
                %s1059 = smul.u32 %s1058, 256
                %s1060 = smul.u32 %s1058, 256
                %s1061 = scalar_lea.vmem %s961, %s1059 [#allocation2]
                %s1062 = scalar_lea.vmem %s972, %s1060
              $region69: #{tpu_custom_call.1} parent=63 // loop_footer
                %s986 = sadd.s32 %s984, 1
              $region70: #{tpu_custom_call.1} parent=63 // loop_footer_branch
                %983 = sbr.rel target = $region66
              $region71: #{tpu_custom_call.1} parent=63 // loop_exit
                _
              %s1063 = sshrl.u32 %s968, 5
              %s1064 = sand.u32 %s968, 31
              %s1065 = smul.u32 %s1063, 32
              %s1066 = smul.u32 8, %s1065
              %s1067 = scalar_lea.vmem %s961, %s1066 [#allocation2]
              %s1068 = smul.u32 8, %s1065
              %s1069 = scalar_lea.vmem %s972, %s1068
              // While loop
              $region72: #{tpu_custom_call.1} parent=63 // loop_pre_header
                _
              $region73: #{tpu_custom_call.1} parent=63 // loop_header
                %s1071 = sphi 0, %s1073
                %p1072 = scmp.ge.s32.totalorder %s1071, %s1064
                %s1076 = sphi 0, %s1083
                %s1077 = sphi %s1067, %s1086
                %s1078 = sphi %s1069, %s1087
              $region74: #{tpu_custom_call.1} parent=63 // loop_header_branch
                %1075 = sbr.rel (%p1072) target = $region78
              $region75: #{tpu_custom_call.1} parent=63 // loop_body
                %v1079 = vld [vmem:[%s1077] sm:%s981]
                %1080 = vst [vmem:[%s1078] sm:%s981] %v1079
                %s1081 = sadd.s32 1, %s1076
                %p1082 = scmp.ge.s32.totalorder %s1081, %s1064
                %s1083 = scalar_select %p1082, 0, %s1081
                %s1084 = smul.u32 %s1083, 8
                %s1085 = smul.u32 %s1083, 8
                %s1086 = scalar_lea.vmem %s1067, %s1084 [#allocation2]
                %s1087 = scalar_lea.vmem %s1069, %s1085
              $region76: #{tpu_custom_call.1} parent=63 // loop_footer
                %s1073 = sadd.s32 %s1071, 1
              $region77: #{tpu_custom_call.1} parent=63 // loop_footer_branch
                %1070 = sbr.rel target = $region73
              $region78: #{tpu_custom_call.1} parent=63 // loop_exit
                _
            $region64: #{tpu_custom_call.1} parent=55 // pred_fallthru
              _
          $region56: #{tpu_custom_call.1} parent=51 // pred_fallthru
            _
          %1198 = vnop
        $region52: #{tpu_custom_call.1} parent=47 // pred_fallthru
          _
      $region48: #{tpu_custom_call.1} parent=5 // pred_fallthru
        _
      %p1199 = scmp.le.s32.totalorder 2, %s13
      // Predicated region
      $region101: #{tpu_custom_call.1} parent=5 // pred_check
        %p1200 = pneg %p1199
      $region102: #{tpu_custom_call.1} parent=5 // pred_check_branch
        %1202 = sbr.rel (%p1200) target = $region104
      $region103: #{tpu_custom_call.1} parent=5 // pred_region
        %s1203 = ssub.s32 %s13, 2
        // Predicated region
        $region105: #{tpu_custom_call.1} parent=103 // pred_check
          %p1204 = pneg %p194
        $region106: #{tpu_custom_call.1} parent=103 // pred_check_branch
          %1206 = sbr.rel (%p1204) target = $region108
        $region107: #{tpu_custom_call.1} parent=103 // pred_region
          %s1207 = sand.u32 %s179, 1
          %s1208 = sand.u32 %s179, 1
          %s1209 = smul.addr %s1208, 256
          %s1210 = scalar_lea.vmem [#allocation2], %s1209
        $region108: #{tpu_custom_call.1} parent=103 // pred_fallthru
          _
      $region104: #{tpu_custom_call.1} parent=5 // pred_fallthru
        _
    $region6: #{tpu_custom_call.1} parent=1 // loop_footer
      %s17 = sadd.s32 1, %s13
    $region7: #{tpu_custom_call.1} parent=1 // loop_footer_branch
      %12 = sbr.rel target = $region3
    $region8: #{tpu_custom_call.1} parent=1 // loop_exit
      _

</llo_original>
